<compile_context>
chip_gen: v5e
topology: v5e:2x2
jax: 0.10.0
libtpu: 0.0.40
codegen_flags: <defaults>
</compile_context>

<pallas_src>
import functools

import jax
import jax.numpy as jnp
from jax.experimental import pallas as pl
from jax.experimental.pallas import tpu as pltpu

_LANES = 128
_SUBLANES = 8


def _round_up(x, m):
    return ((x + m - 1) // m) * m


def _cdiv(a, b):
    return (a + b - 1) // b


def _router_kernel(x_ref, w_ref, o_ref, *, num_experts, e_pad):
    # x_ref: (tm, H) native dtype   w_ref: (H, e_pad) bf16   o_ref: (tm, E) f32
    # Cast x to the MXU compute dtype here (VMEM-only) — NOT in the wrapper,
    # so the HBM stream of x stays a single pass in its native dtype.
    x = x_ref[...].astype(w_ref.dtype)
    logits = jnp.dot(x, w_ref[...], preferred_element_type=jnp.float32)
    if e_pad != num_experts:
        # Padded expert columns must not perturb max / sum.
        col = jax.lax.broadcasted_iota(jnp.int32, logits.shape, 1)
        logits = jnp.where(col < num_experts, logits, -jnp.inf)
    m = jnp.max(logits, axis=-1, keepdims=True)
    e = jnp.exp(logits - m)
    s = jnp.sum(e, axis=-1, keepdims=True)
    probs = e / s                       # exact divide: rows sum to 1
    if e_pad != num_experts:
        probs = probs[:, :num_experts]  # compact store: no padded-column writeback
    o_ref[...] = probs.astype(o_ref.dtype)


def prepare_gate_weight(gate_weight, compute_dtype=jnp.bfloat16):
    """Call-once prep: (E, H) nn.Linear weight -> (H, e_pad) compute_dtype, zero-padded."""
    E, H = gate_weight.shape
    e_pad = _round_up(max(E, _LANES), _LANES)
    w_t = gate_weight.T.astype(compute_dtype)            # (H, E)
    if e_pad != E:
        w_t = jnp.pad(w_t, ((0, 0), (0, e_pad - E)))
    return w_t                                            # (H, e_pad)


def _vmem_budget_bytes():
    # Physical VMEM: 128 MiB on v5e/v6e, 64 MiB on v7x.  Leave headroom for
    # compiler-internal scratch (f32 logits/exp intermediates, regalloc slop).
    try:
        phys = int(pltpu.get_tpu_info().vmem_capacity_bytes)
    except Exception:
        phys = 64 * 1024 * 1024          # conservative default (v7x)
    return min(phys - 12 * 1024 * 1024, 96 * 1024 * 1024)


def _pick_row_tile(M, H, e_pad, n_out, x_bytes, w_bytes, out_bytes, tm_req, budget):
    tm = min(tm_req, _round_up(M, _SUBLANES))
    # v7x has 2 TensorCores: once M is non-trivial, make sure the "parallel"
    # row axis has at least 2 grid steps so both cores get work.
    if M > 64:
        tm = min(tm, _round_up(_cdiv(M, 2), _SUBLANES))
    tm = max(tm, _SUBLANES)
    while True:
        footprint = (
            2 * tm * H * x_bytes            # x double-buffer
            + 2 * H * e_pad * w_bytes       # gate weight (grid-invariant)
            + 2 * tm * n_out * out_bytes    # output double-buffer
            + 4 * tm * e_pad * 4            # f32 logits/exp/probs intermediates
        )
        if footprint <= budget or tm <= _SUBLANES:
            return tm, footprint
        tm = max(_SUBLANES, _round_up(tm // 2, _SUBLANES))


def router_forward(x, w_prepared, num_experts, *, tm=None):
    """x: (..., in_features); w_prepared: (in_features, e_pad) from prepare_gate_weight."""
    orig_shape = x.shape
    H = orig_shape[-1]
    e_pad = w_prepared.shape[1]
    assert w_prepared.shape[0] == H

    # No dtype cast and no row padding here: each would cost a full extra HBM
    # pass over x.  Reshape of leading dims is metadata-only.
    x2d = x.reshape(-1, H)
    M = x2d.shape[0]

    budget = _vmem_budget_bytes()
    if tm is None:
        tm = 1024 if budget >= 80 * 1024 * 1024 else 512   # v5e/v6e vs v7x
    tm_eff, footprint = _pick_row_tile(
        M, H, e_pad, num_experts,
        x2d.dtype.itemsize, w_prepared.dtype.itemsize, 4, tm, budget)
    grid_m = _cdiv(M, tm_eff)   # ragged M handled by partial boundary blocks

    vmem_limit = max(min(footprint + 8 * 1024 * 1024, budget), 16 * 1024 * 1024)

    kernel = functools.partial(_router_kernel, num_experts=num_experts, e_pad=e_pad)

    out = pl.pallas_call(
        kernel,
        out_shape=jax.ShapeDtypeStruct((M, num_experts), jnp.float32),
        grid_spec=pltpu.PrefetchScalarGridSpec(
            num_scalar_prefetch=0,
            grid=(grid_m,),
            in_specs=[
                pl.BlockSpec((tm_eff, H), lambda i: (i, 0)),   # x row tile (native dtype)
                pl.BlockSpec((H, e_pad), lambda i: (0, 0)),    # resident gate weight
            ],
            # Compact output: last dim == full array dim, so no padded columns
            # and no wrapper-side slice pass.
            out_specs=pl.BlockSpec((tm_eff, num_experts), lambda i: (i, 0)),
        ),
        compiler_params=pltpu.CompilerParams(
            dimension_semantics=("parallel",),
            vmem_limit_bytes=int(vmem_limit),
        ),
    )(x2d, w_prepared)

    return out.reshape(*orig_shape[:-1], num_experts)


if __name__ == "__main__":
    # Small shapes consistent with the module: hidden size 32, 8 experts.
    batch, seq, in_features, num_experts = 2, 8, 32, 8

    key = jax.random.PRNGKey(0)
    kx, kw = jax.random.split(key)

    x = jax.random.normal(kx, (batch, seq, in_features), dtype=jnp.float32)
    # nn.Linear-style init: weight shape (num_experts, in_features), bound 1/sqrt(H).
    bound = 1.0 / (in_features ** 0.5)
    gate_weight = jax.random.uniform(
        kw, (num_experts, in_features), minval=-bound, maxval=bound, dtype=jnp.float32)

    w_prepared = prepare_gate_weight(gate_weight)        # transpose+pad+bf16, hoisted
    probs = router_forward(x, w_prepared, num_experts)
    probs = jax.block_until_ready(probs)

    # Reference with the same bf16 quantization the in-kernel MXU path uses.
    x_q = x.astype(jnp.bfloat16).astype(jnp.float32)
    w_q = gate_weight.astype(jnp.bfloat16).astype(jnp.float32)
    ref = jax.nn.softmax(x_q @ w_q.T, axis=-1)

    assert probs.shape == (batch, seq, num_experts)
    assert jnp.allclose(probs, ref, atol=2e-3, rtol=2e-3)
    assert jnp.allclose(jnp.sum(probs, axis=-1), 1.0, atol=1e-3)

    # Ragged M (not a multiple of the 8-row sublane tile) exercises the
    # partial-boundary-block path that replaced the wrapper-side jnp.pad.
    x_r = jax.random.normal(jax.random.PRNGKey(1), (3, in_features), dtype=jnp.float32)
    probs_r = jax.block_until_ready(router_forward(x_r, w_prepared, num_experts))
    ref_r = jax.nn.softmax(
        x_r.astype(jnp.bfloat16).astype(jnp.float32) @ w_q.T, axis=-1)
    assert probs_r.shape == (3, num_experts)
    assert jnp.allclose(probs_r, ref_r, atol=2e-3, rtol=2e-3)

    print("KERNEL_OK")
</pallas_src>

<mosaic_0001>
module attributes {stable_mosaic.version = 11 : i64} {
  func.func @_router_kernel(%arg0: i32, %arg1: memref<16x32xf32, #tpu.memory_space<vmem>>, %arg2: memref<32x128xbf16, #tpu.memory_space<vmem>>, %arg3: memref<16x8xf32, #tpu.memory_space<vmem>>) attributes {dimension_semantics = [#tpu.dimension_semantics<parallel>], iteration_bounds = array<i64: 1>, scalar_prefetch = 0 : i64, scratch_operands = 0 : i64, tpu.core_type = #tpu.core_type<tc>, window_params = [{transform_indices = @transform_0, window_bounds = array<i64: 16, 32>}, {pipeline_mode = #tpu.pipeline_mode<synchronous>, transform_indices = @transform_1, window_bounds = array<i64: 32, 128>}, {transform_indices = @transform_2, window_bounds = array<i64: 16, 8>}]} {
    %c0 = arith.constant 0 : index
    %c0_0 = arith.constant 0 : index
    %0 = vector.load %arg1[%c0, %c0_0] : memref<16x32xf32, #tpu.memory_space<vmem>>, vector<16x32xf32>
    %1 = arith.truncf %0 : vector<16x32xf32> to vector<16x32xbf16>
    %c0_1 = arith.constant 0 : index
    %c0_2 = arith.constant 0 : index
    %2 = vector.load %arg2[%c0_1, %c0_2] : memref<32x128xbf16, #tpu.memory_space<vmem>>, vector<32x128xbf16>
    %cst = arith.constant dense<0.000000e+00> : vector<16x128xf32>
    %3 = tpu.matmul %1, %2, %cst {dimension_numbers = #tpu.dot_dimension_numbers<[1], [0], [0], [1], [0, 0, 1, 1], [], []>} : vector<16x32xbf16>, vector<32x128xbf16>, vector<16x128xf32> -> vector<16x128xf32>
    %4 = tpu.iota {dimensions = array<i32: 1>} : vector<16x128xi32>
    %c8_i32 = arith.constant 8 : i32
    %5 = vector.broadcast %c8_i32 : i32 to vector<16x128xi32>
    %6 = arith.cmpi slt, %4, %5 : vector<16x128xi32>
    %cst_3 = arith.constant 0xFF800000 : f32
    %7 = vector.broadcast %cst_3 : f32 to vector<16x128xf32>
    %8 = arith.select %6, %3, %7 : vector<16x128xi1>, vector<16x128xf32>
    %cst_4 = arith.constant dense<0xFF800000> : vector<16xf32>
    %9 = vector.multi_reduction <maximumf>, %8, %cst_4 [1] : vector<16x128xf32> to vector<16xf32>
    %10 = vector.shape_cast %9 : vector<16xf32> to vector<16x1xf32>
    %11 = vector.broadcast %10 : vector<16x1xf32> to vector<16x128xf32>
    %12 = arith.subf %8, %11 : vector<16x128xf32>
    %13 = math.exp %12 : vector<16x128xf32>
    %cst_5 = arith.constant dense<0.000000e+00> : vector<16xf32>
    %14 = vector.multi_reduction <add>, %13, %cst_5 [1] : vector<16x128xf32> to vector<16xf32>
    %15 = vector.shape_cast %14 : vector<16xf32> to vector<16x1xf32>
    %16 = vector.broadcast %15 : vector<16x1xf32> to vector<16x128xf32>
    %17 = arith.divf %13, %16 : vector<16x128xf32>
    %18 = vector.extract_strided_slice %17 {offsets = [0, 0], sizes = [16, 8], strides = [1, 1]} : vector<16x128xf32> to vector<16x8xf32>
    %c0_6 = arith.constant 0 : index
    %c0_7 = arith.constant 0 : index
    %19 = vector.load %arg3[%c0_6, %c0_7] : memref<16x8xf32, #tpu.memory_space<vmem>>, vector<16x8xf32>
    tpu.vector_store %arg3[%c0_6, %c0_7], %18 {strides = array<i32>} : memref<16x8xf32, #tpu.memory_space<vmem>>, vector<16x8xf32>,
    return
  }
  func.func @transform_0(%arg0: i32) -> (i32, i32) {
    %c0_i32 = arith.constant 0 : i32
    %c0_i32_0 = arith.constant 0 : i32
    return %arg0, %c0_i32 : i32, i32
  }
  func.func @transform_1(%arg0: i32) -> (i32, i32) {
    %c0_i32 = arith.constant 0 : i32
    %c0_i32_0 = arith.constant 0 : i32
    %c0_i32_1 = arith.constant 0 : i32
    return %c0_i32, %c0_i32_0 : i32, i32
  }
  func.func @transform_2(%arg0: i32) -> (i32, i32) {
    %c0_i32 = arith.constant 0 : i32
    %c0_i32_0 = arith.constant 0 : i32
    return %arg0, %c0_i32 : i32, i32
  }
}

</mosaic_0001>

<llo_original>
// kernel: tpu_custom_call.1
$region0: #{tpu_custom_call.1}
  #allocation0 [shape = 'u32[]', space=smem, size = 0x4, offset = 0x4, fixed_abs, tag = 'smem constant byte address 0x4 - core index']
  #allocation1 [shape = 'u32[72,128]{1,0:T(1,128)}', space=vmem, size = 0x9000, scoped, tag = 'internal scratch']
  %s0 = inlined_call_operand.hbm [shape: f32[16,32], index: 0, kind: input, shape index: {}]
  %s1 = inlined_call_operand.hbm [shape: bf16[32,128], index: 1, kind: input, shape index: {}]
  %s2 = inlined_call_operand.vmem [shape: f32[16,8], index: 2, kind: output, shape index: {}]
  %s3 = sld [smem:[#allocation0]]
  $region26: #{tpu_custom_call.1} parent=0
    _
  %s5 = ssub.s32 1, %s3
  %s6 = scalar_select 0, %s5, %s3
  $region1: #{tpu_custom_call.1} parent=0
    #allocation2 [shape = 'u8[8192]{0}', space=vmem, size = 0x2000, scoped, tag = 'input window, operand 0, single buffered']
    #allocation3 [shape = 's32[1]{0}', space=sflag, size = 0x4, scoped, tag = 'scoped memory for tpu_custom_call.1']
    #allocation4 [shape = 'u8[8192]{0}', space=vmem, size = 0x2000, scoped, tag = 'input window, operand 1, single buffered']
    #allocation5 [shape = 's32[1]{0}', space=sflag, size = 0x4, scoped, tag = 'scoped memory for tpu_custom_call.1']
    %7 = vsyncpa [#allocation3], 0
    %8 = vsyncpa [#allocation5], 0
    // Predicated region
    $region2: #{tpu_custom_call.1} parent=1 // pred_check
      _
    $region3: #{tpu_custom_call.1} parent=1 // pred_check_branch
      %10 = sbr.rel (0) target = $region5
    $region4: #{tpu_custom_call.1} parent=1 // pred_region
      %12 = vsyncadd [#allocation3], 0
      %s13 = sshll.u32 %s0, 4
      %s14 = int_to_ptr.hbm [resolvable:$true] %s13
      %s15 = sshll.u32 [#allocation2], 4
      %s16 = int_to_ptr.vmem [resolvable:$true] %s15
      %21 = dma.hbm_to_vmem [thread:$0]  %s14, 256, %s16, [#allocation3], 128, 128, 8
    $region5: #{tpu_custom_call.1} parent=1 // pred_fallthru
      _
    // Predicated region
    $region6: #{tpu_custom_call.1} parent=1 // pred_check
      _
    $region7: #{tpu_custom_call.1} parent=1 // pred_check_branch
      %23 = sbr.rel (0) target = $region9
    $region8: #{tpu_custom_call.1} parent=1 // pred_region
      %25 = vsyncadd [#allocation5], 0
      %s26 = sshll.u32 %s1, 4
      %s27 = int_to_ptr.hbm [resolvable:$true] %s26
      %s28 = sshll.u32 [#allocation4], 4
      %s29 = int_to_ptr.vmem [resolvable:$true] %s28
      %34 = dma.hbm_to_vmem [thread:$0]  %s27, 256, %s29, [#allocation5], 64, 64, 4
    $region9: #{tpu_custom_call.1} parent=1 // pred_fallthru
      _
    // Predicated region
    $region10: #{tpu_custom_call.1} parent=1 // pred_check
      _
    $region11: #{tpu_custom_call.1} parent=1 // pred_check_branch
      %36 = sbr.rel (0) target = $region13
    $region12: #{tpu_custom_call.1} parent=1 // pred_region
      %38 = dma.done [#allocation3], 256
    $region13: #{tpu_custom_call.1} parent=1 // pred_fallthru
      _
    // Predicated region
    $region14: #{tpu_custom_call.1} parent=1 // pred_check
      _
    $region15: #{tpu_custom_call.1} parent=1 // pred_check_branch
      %40 = sbr.rel (0) target = $region17
    $region16: #{tpu_custom_call.1} parent=1 // pred_region
      %42 = dma.done [#allocation5], 256
    $region17: #{tpu_custom_call.1} parent=1 // pred_fallthru
      _
    %v44 = vld [vmem:[#allocation2] sm:$0xff]
    %v45 = vld [vmem:[#allocation2 + $0x8] sm:$0xff]
    %v46 = vpack.c.bf16 %v45, %v44
    %v47 = vld [vmem:[#allocation4] sm:$0xf]
    %v48 = vld [vmem:[#allocation4 + $0x4] sm:$0xf]
    %v49 = vld [vmem:[#allocation4 + $0x8] sm:$0xf]
    %v50 = vld [vmem:[#allocation4 + $0xc] sm:$0xf]
    %v55 = vunpack.c.l.b16 %v47
    %v56 = vunpack.c.l.b16 %v48
    %v57 = vunpack.c.l.b16 %v49
    %v58 = vunpack.c.l.b16 %v50
    %v59 = vpack.c.b16 %v56, %v55
    %v60 = vpack.c.b16 %v58, %v57
    %vm63 = vcmask 261120
    %v65 = vsel %vm63, %v46, 0
    %67 = vmatpush.bf16.msra.mxu0 0
    %68 = vmatpush.bf16.msra.mxu0 0
    %69 = vmatpush.bf16.msra.mxu0 0
    %70 = vmatpush.bf16.msra.mxu0 0
    %71 = vmatpush.bf16.msra.mxu0 0
    %72 = vmatpush.bf16.msra.mxu0 0
    %73 = vmatpush.bf16.msra.mxu0 %v60
    %74 = vmatpush.bf16.msra.mxu0 %v59
    %75 = vmatmul.bf16.gmra.mxu0 %v65
    %v76 = vpop.f32.mrf.mxu0
    %v77 = vadd.f32 0.0, %v76
    %v78 = vpop.f32.mrf.mxu0
    %v79 = vadd.f32 0.0, %v78
    %80 = vdwg.mxu0
    %v81 = vlaneseq
    %v82 = vand.u32 %v81, 127
    %vm83 = vcmp.lt.s32.totalorder %v82, 8
    %v84 = vsel %vm83, %v77, -inf
    %v85 = vsel %vm83, %v79, -inf
    %86 = vmax.xlane.f32.xlu0 %v84
    %v87 = vpop.xlane.xlu0 %86
    %88 = vmax.xlane.f32.xlu0 %v85
    %v89 = vpop.xlane.xlu0 %88
    %v90 = vsub.f32 %v84, %v87
    %v91 = vsub.f32 %v85, %v89
    %v92 = vmul.f32 %v90, 1.442695
    %v93 = vpow.pop %v92
    %v94 = vmul.f32 %v91, 1.442695
    %v95 = vpow.pop %v94
    %96 = vadd.xlane.f32.xlu0 %v93
    %v97 = vpop.xlane.xlu0 %96
    %98 = vadd.xlane.f32.xlu0 %v95
    %v99 = vpop.xlane.xlu0 %98
    %v100 = vrcp.pop %v97
    %v101 = vmul.f32 %v97, %v100
    %v102 = vsub.f32 1.0, %v101
    %v103 = vmul.f32 %v100, %v102
    %v104 = vadd.f32 %v100, %v103
    %vm105 = vweird.f32 %v97
    %vm106 = vweird.f32 %v100
    %vm107 = vmor %vm105, %vm106
    %v108 = vsel %vm107, %v100, %v104
    %v109 = vand.u32 2147483647, %v97
    %vm110 = vcmp.eq.f32.partialorder %v109, 8.507059e+37
    %v111 = vand.u32 %v97, 2147483648
    %v112 = vor.u32 1.1754944e-38, %v111
    %v113 = vsel %vm110, %v112, %v108
    %v114 = vmul.f32 %v93, %v113
    %v115 = vrcp.pop %v99
    %v116 = vmul.f32 %v99, %v115
    %v117 = vsub.f32 1.0, %v116
    %v118 = vmul.f32 %v115, %v117
    %v119 = vadd.f32 %v115, %v118
    %vm120 = vweird.f32 %v99
    %vm121 = vweird.f32 %v115
    %vm122 = vmor %vm120, %vm121
    %v123 = vsel %vm122, %v115, %v119
    %v124 = vand.u32 2147483647, %v99
    %vm125 = vcmp.eq.f32.partialorder %v124, 8.507059e+37
    %v126 = vand.u32 %v99, 2147483648
    %v127 = vor.u32 1.1754944e-38, %v126
    %v128 = vsel %vm125, %v127, %v123
    %v129 = vmul.f32 %v95, %v128
    %vm130 = vcmask 64512
    %131 = vst.msk [vmem:[%s2] sm:$0xff] %vm130, %v114
    %132 = vst.msk [vmem:[%s2 + $0x8] sm:$0xff] %vm130, %v129
    // Predicated region
    $region18: #{tpu_custom_call.1} parent=1 // pred_check
      _
    $region19: #{tpu_custom_call.1} parent=1 // pred_check_branch
      %134 = sbr.rel (0) target = $region21
    $region20: #{tpu_custom_call.1} parent=1 // pred_region
      _
    $region21: #{tpu_custom_call.1} parent=1 // pred_fallthru
      _
    // Predicated region
    $region22: #{tpu_custom_call.1} parent=1 // pred_check
      _
    $region23: #{tpu_custom_call.1} parent=1 // pred_check_branch
      %136 = sbr.rel (0) target = $region25
    $region24: #{tpu_custom_call.1} parent=1 // pred_region
      _
    $region25: #{tpu_custom_call.1} parent=1 // pred_fallthru
      _
    %137 = vsyncpa [#allocation3], 1
    %138 = vsyncpa [#allocation5], 1

</llo_original>
